<compile_context>
chip_gen: v6e
topology: v6e:2x2x1
jax: 0.10.0
libtpu: 0.0.40
codegen_flags: <defaults>
</compile_context>

<pallas_src>
import jax
import jax.numpy as jnp
from jax.experimental import pallas as pl
from jax.experimental.pallas import tpu as pltpu

LEAKY_SLOPE = 0.2
BN_EPS = 0.8          # nn.BatchNorm1d(num_features, 0.8) -> eps=0.8
LANE = 128


def _round_up(n, m=LANE):
    return ((n + m - 1) // m) * m


def _bn_lrelu(h, gamma, beta):
    """Training-mode BatchNorm1d (biased batch var, eps=0.8) folded into a
    per-feature scale/shift, followed by LeakyReLU(0.2).  h is f32."""
    mean = jnp.mean(h, axis=0, keepdims=True)
    var = jnp.mean(h * h, axis=0, keepdims=True) - mean * mean
    scale = gamma * jax.lax.rsqrt(var + BN_EPS)      # rsqrt -> EUP slot
    shift = beta - mean * scale
    hn = h * scale + shift
    return jnp.maximum(hn, LEAKY_SLOPE * hn)         # LeakyReLU(0.2)


def generator_kernel(
    x_ref,
    w1_ref, g1_ref, be1_ref,
    w2_ref, g2_ref, be2_ref,
    w3_ref, b3_ref,
    out_ref,
):
    # x / weights are bf16 (MXU-native); accumulation + BN math in f32.
    x = x_ref[...]

    # --- block 1: Linear (bias cancels under BN) -> BN -> LeakyReLU ---
    h1 = jnp.dot(x, w1_ref[...], preferred_element_type=jnp.float32)
    h1 = _bn_lrelu(h1, g1_ref[...], be1_ref[...]).astype(jnp.bfloat16)

    # --- block 2: Linear (bias cancels under BN) -> BN -> LeakyReLU ---
    h2 = jnp.dot(h1, w2_ref[...], preferred_element_type=jnp.float32)
    h2 = _bn_lrelu(h2, g2_ref[...], be2_ref[...]).astype(jnp.bfloat16)

    # --- block 3: Linear -> Tanh ---
    h3 = jnp.dot(h2, w3_ref[...], preferred_element_type=jnp.float32) + b3_ref[...]
    out_ref[...] = jnp.tanh(h3).astype(out_ref.dtype)


@jax.jit
def _generator_padded(x, packed):
    """Runs the fused kernel on lane-padded parameters; returns padded output."""
    B = x.shape[0]
    out_pad = packed["w3"].shape[1]

    inputs = (
        x.astype(jnp.bfloat16),
        packed["w1"], packed["g1"], packed["be1"],
        packed["w2"], packed["g2"], packed["be2"],
        packed["w3"], packed["b3"],
    )
    vmem = pl.BlockSpec(memory_space=pltpu.MemorySpace.VMEM)
    return pl.pallas_call(
        generator_kernel,
        out_shape=jax.ShapeDtypeStruct((B, out_pad), jnp.float32),
        in_specs=[vmem] * len(inputs),
        out_specs=vmem,
        compiler_params=pltpu.CompilerParams(
            vmem_limit_bytes=32 * 1024 * 1024),
    )(*inputs)


def generator_forward(x, packed, output_size):
    """x: (B, input_size) float32.  packed: output of pack_params."""
    return _generator_padded(x, packed)[:, :output_size]


def init_params(key, input_size, hidden_size, output_size):
    """PyTorch-faithful parameters (uniform fan-in init), f32, layout
    (fan_in, fan_out) == torch weight.T.  b1/b2 are created for fidelity but
    cancel exactly under training-mode BatchNorm and are not fed to the kernel."""
    ks = jax.random.split(key, 6)

    def linear(kw, kb, fan_in, fan_out):
        bound = 1.0 / jnp.sqrt(fan_in)
        w = jax.random.uniform(kw, (fan_in, fan_out), jnp.float32, -bound, bound)
        b = jax.random.uniform(kb, (1, fan_out), jnp.float32, -bound, bound)
        return w, b

    w1, b1 = linear(ks[0], ks[1], input_size, hidden_size)
    w2, b2 = linear(ks[2], ks[3], hidden_size, hidden_size * 4)
    w3, b3 = linear(ks[4], ks[5], hidden_size * 4, output_size)

    # BatchNorm affine params: gamma=1, beta=0 (PyTorch default init)
    g1 = jnp.ones((1, hidden_size), jnp.float32)
    be1 = jnp.zeros((1, hidden_size), jnp.float32)
    g2 = jnp.ones((1, hidden_size * 4), jnp.float32)
    be2 = jnp.zeros((1, hidden_size * 4), jnp.float32)

    return dict(w1=w1, b1=b1, g1=g1, be1=be1,
                w2=w2, b2=b2, g2=g2, be2=be2,
                w3=w3, b3=b3)


def pack_params(p, input_size, hidden_size, output_size):
    """Zero-pad all feature dims to multiples of 128 lanes and cast weights to
    bf16.  Padded features produce exactly 0 through BN/LeakyReLU/Tanh, so the
    logical result is unchanged (the wrapper slices the output back)."""
    hp = _round_up(hidden_size)
    h4p = _round_up(4 * hidden_size)
    op = _round_up(output_size)

    def pad2(a, rows, cols):
        return jnp.pad(a, ((0, rows - a.shape[0]), (0, cols - a.shape[1])))

    return dict(
        w1=pad2(p["w1"], input_size, hp).astype(jnp.bfloat16),
        g1=pad2(p["g1"], 1, hp),
        be1=pad2(p["be1"], 1, hp),
        w2=pad2(p["w2"], hp, h4p).astype(jnp.bfloat16),
        g2=pad2(p["g2"], 1, h4p),
        be2=pad2(p["be2"], 1, h4p),
        w3=pad2(p["w3"], h4p, op).astype(jnp.bfloat16),
        b3=pad2(p["b3"], 1, op),
    )


def _reference_mirror(x, packed, output_size):
    """Pure-JAX reference mirroring the kernel math exactly (bf16 weights /
    activations, folded BN, no b1/b2)."""
    xb = x.astype(jnp.bfloat16)
    h = jnp.dot(xb, packed["w1"], preferred_element_type=jnp.float32)
    h = _bn_lrelu(h, packed["g1"], packed["be1"]).astype(jnp.bfloat16)
    h = jnp.dot(h, packed["w2"], preferred_element_type=jnp.float32)
    h = _bn_lrelu(h, packed["g2"], packed["be2"]).astype(jnp.bfloat16)
    h = jnp.dot(h, packed["w3"], preferred_element_type=jnp.float32) + packed["b3"]
    return jnp.tanh(h)[:, :output_size]


def _reference_f32(x, p):
    """PyTorch-faithful f32 forward (training-mode BN), including the
    mathematically-cancelling linear biases b1/b2."""
    def bn_lrelu(h, g, b):
        mean = jnp.mean(h, axis=0, keepdims=True)
        var = jnp.mean((h - mean) ** 2, axis=0, keepdims=True)
        hn = (h - mean) * jax.lax.rsqrt(var + BN_EPS) * g + b
        return jnp.where(hn > 0, hn, LEAKY_SLOPE * hn)

    h = x @ p["w1"] + p["b1"]
    h = bn_lrelu(h, p["g1"], p["be1"])
    h = h @ p["w2"] + p["b2"]
    h = bn_lrelu(h, p["g2"], p["be2"])
    return jnp.tanh(h @ p["w3"] + p["b3"])


if __name__ == "__main__":
    B, INPUT_SIZE, HIDDEN_SIZE, OUTPUT_SIZE = 8, 16, 32, 64

    key = jax.random.PRNGKey(0)
    kx, kp = jax.random.split(key)
    x = jax.random.normal(kx, (B, INPUT_SIZE), jnp.float32)

    params = init_params(kp, INPUT_SIZE, HIDDEN_SIZE, OUTPUT_SIZE)
    packed = pack_params(params, INPUT_SIZE, HIDDEN_SIZE, OUTPUT_SIZE)

    out = generator_forward(x, packed, OUTPUT_SIZE)
    jax.block_until_ready(out)
    assert out.shape == (B, OUTPUT_SIZE), out.shape

    # Tight check: exact mirror of the kernel's (bf16) math.
    ref_mirror = _reference_mirror(x, packed, OUTPUT_SIZE)
    assert jnp.allclose(out, ref_mirror, atol=5e-3, rtol=5e-3), "mismatch vs bf16 mirror reference"

    # Loose check: full-precision PyTorch-semantics forward (bf16 weights are
    # the only approximation; outputs are in [-1, 1]).
    ref_f32 = _reference_f32(x, params)
    assert jnp.allclose(out, ref_f32, atol=0.1), "mismatch vs f32 faithful reference"

    print("KERNEL_OK")
</pallas_src>

<mosaic_0001>
module attributes {stable_mosaic.version = 11 : i64} {
  func.func @generator_kernel(%arg0: memref<8x16xbf16, #tpu.memory_space<vmem>>, %arg1: memref<16x128xbf16, #tpu.memory_space<vmem>>, %arg2: memref<1x128xf32, #tpu.memory_space<vmem>>, %arg3: memref<1x128xf32, #tpu.memory_space<vmem>>, %arg4: memref<128x128xbf16, #tpu.memory_space<vmem>>, %arg5: memref<1x128xf32, #tpu.memory_space<vmem>>, %arg6: memref<1x128xf32, #tpu.memory_space<vmem>>, %arg7: memref<128x128xbf16, #tpu.memory_space<vmem>>, %arg8: memref<1x128xf32, #tpu.memory_space<vmem>>, %arg9: memref<8x128xf32, #tpu.memory_space<vmem>>) attributes {dimension_semantics = [], scalar_prefetch = 0 : i64, scratch_operands = 0 : i64, tpu.core_type = #tpu.core_type<tc>} {
    %c0 = arith.constant 0 : index
    %c0_0 = arith.constant 0 : index
    %0 = vector.load %arg0[%c0, %c0_0] : memref<8x16xbf16, #tpu.memory_space<vmem>>, vector<8x16xbf16>
    %c0_1 = arith.constant 0 : index
    %c0_2 = arith.constant 0 : index
    %1 = vector.load %arg1[%c0_1, %c0_2] : memref<16x128xbf16, #tpu.memory_space<vmem>>, vector<16x128xbf16>
    %cst = arith.constant dense<0.000000e+00> : vector<8x128xf32>
    %2 = tpu.matmul %0, %1, %cst {dimension_numbers = #tpu.dot_dimension_numbers<[1], [0], [0], [1], [0, 0, 1, 1], [], []>} : vector<8x16xbf16>, vector<16x128xbf16>, vector<8x128xf32> -> vector<8x128xf32>
    %c0_3 = arith.constant 0 : index
    %c0_4 = arith.constant 0 : index
    %3 = vector.load %arg2[%c0_3, %c0_4] : memref<1x128xf32, #tpu.memory_space<vmem>>, vector<1x128xf32>
    %c0_5 = arith.constant 0 : index
    %c0_6 = arith.constant 0 : index
    %4 = vector.load %arg3[%c0_5, %c0_6] : memref<1x128xf32, #tpu.memory_space<vmem>>, vector<1x128xf32>
    %cst_7 = arith.constant dense<0.000000e+00> : vector<128xf32>
    %5 = vector.multi_reduction <add>, %2, %cst_7 [0] : vector<8x128xf32> to vector<128xf32>
    %6 = vector.shape_cast %5 : vector<128xf32> to vector<1x128xf32>
    %cst_8 = arith.constant 8.000000e+00 : f32
    %7 = vector.broadcast %cst_8 : f32 to vector<1x128xf32>
    %8 = arith.divf %6, %7 : vector<1x128xf32>
    %9 = arith.mulf %2, %2 : vector<8x128xf32>
    %cst_9 = arith.constant dense<0.000000e+00> : vector<128xf32>
    %10 = vector.multi_reduction <add>, %9, %cst_9 [0] : vector<8x128xf32> to vector<128xf32>
    %11 = vector.shape_cast %10 : vector<128xf32> to vector<1x128xf32>
    %cst_10 = arith.constant 8.000000e+00 : f32
    %12 = vector.broadcast %cst_10 : f32 to vector<1x128xf32>
    %13 = arith.divf %11, %12 : vector<1x128xf32>
    %14 = arith.mulf %8, %8 : vector<1x128xf32>
    %15 = arith.subf %13, %14 : vector<1x128xf32>
    %cst_11 = arith.constant 8.000000e-01 : f32
    %16 = vector.broadcast %cst_11 : f32 to vector<1x128xf32>
    %17 = arith.addf %15, %16 : vector<1x128xf32>
    %18 = math.rsqrt %17 : vector<1x128xf32>
    %19 = arith.mulf %3, %18 : vector<1x128xf32>
    %20 = arith.mulf %8, %19 : vector<1x128xf32>
    %21 = arith.subf %4, %20 : vector<1x128xf32>
    %22 = vector.broadcast %19 : vector<1x128xf32> to vector<8x128xf32>
    %23 = arith.mulf %2, %22 : vector<8x128xf32>
    %24 = vector.broadcast %21 : vector<1x128xf32> to vector<8x128xf32>
    %25 = arith.addf %23, %24 : vector<8x128xf32>
    %cst_12 = arith.constant 2.000000e-01 : f32
    %26 = vector.broadcast %cst_12 : f32 to vector<8x128xf32>
    %27 = arith.mulf %26, %25 : vector<8x128xf32>
    %28 = arith.maximumf %25, %27 : vector<8x128xf32>
    %29 = arith.truncf %28 : vector<8x128xf32> to vector<8x128xbf16>
    %c0_13 = arith.constant 0 : index
    %c0_14 = arith.constant 0 : index
    %30 = vector.load %arg4[%c0_13, %c0_14] : memref<128x128xbf16, #tpu.memory_space<vmem>>, vector<128x128xbf16>
    %cst_15 = arith.constant dense<0.000000e+00> : vector<8x128xf32>
    %31 = tpu.matmul %29, %30, %cst_15 {dimension_numbers = #tpu.dot_dimension_numbers<[1], [0], [0], [1], [0, 0, 1, 1], [], []>} : vector<8x128xbf16>, vector<128x128xbf16>, vector<8x128xf32> -> vector<8x128xf32>
    %c0_16 = arith.constant 0 : index
    %c0_17 = arith.constant 0 : index
    %32 = vector.load %arg5[%c0_16, %c0_17] : memref<1x128xf32, #tpu.memory_space<vmem>>, vector<1x128xf32>
    %c0_18 = arith.constant 0 : index
    %c0_19 = arith.constant 0 : index
    %33 = vector.load %arg6[%c0_18, %c0_19] : memref<1x128xf32, #tpu.memory_space<vmem>>, vector<1x128xf32>
    %cst_20 = arith.constant dense<0.000000e+00> : vector<128xf32>
    %34 = vector.multi_reduction <add>, %31, %cst_20 [0] : vector<8x128xf32> to vector<128xf32>
    %35 = vector.shape_cast %34 : vector<128xf32> to vector<1x128xf32>
    %cst_21 = arith.constant 8.000000e+00 : f32
    %36 = vector.broadcast %cst_21 : f32 to vector<1x128xf32>
    %37 = arith.divf %35, %36 : vector<1x128xf32>
    %38 = arith.mulf %31, %31 : vector<8x128xf32>
    %cst_22 = arith.constant dense<0.000000e+00> : vector<128xf32>
    %39 = vector.multi_reduction <add>, %38, %cst_22 [0] : vector<8x128xf32> to vector<128xf32>
    %40 = vector.shape_cast %39 : vector<128xf32> to vector<1x128xf32>
    %cst_23 = arith.constant 8.000000e+00 : f32
    %41 = vector.broadcast %cst_23 : f32 to vector<1x128xf32>
    %42 = arith.divf %40, %41 : vector<1x128xf32>
    %43 = arith.mulf %37, %37 : vector<1x128xf32>
    %44 = arith.subf %42, %43 : vector<1x128xf32>
    %cst_24 = arith.constant 8.000000e-01 : f32
    %45 = vector.broadcast %cst_24 : f32 to vector<1x128xf32>
    %46 = arith.addf %44, %45 : vector<1x128xf32>
    %47 = math.rsqrt %46 : vector<1x128xf32>
    %48 = arith.mulf %32, %47 : vector<1x128xf32>
    %49 = arith.mulf %37, %48 : vector<1x128xf32>
    %50 = arith.subf %33, %49 : vector<1x128xf32>
    %51 = vector.broadcast %48 : vector<1x128xf32> to vector<8x128xf32>
    %52 = arith.mulf %31, %51 : vector<8x128xf32>
    %53 = vector.broadcast %50 : vector<1x128xf32> to vector<8x128xf32>
    %54 = arith.addf %52, %53 : vector<8x128xf32>
    %cst_25 = arith.constant 2.000000e-01 : f32
    %55 = vector.broadcast %cst_25 : f32 to vector<8x128xf32>
    %56 = arith.mulf %55, %54 : vector<8x128xf32>
    %57 = arith.maximumf %54, %56 : vector<8x128xf32>
    %58 = arith.truncf %57 : vector<8x128xf32> to vector<8x128xbf16>
    %c0_26 = arith.constant 0 : index
    %c0_27 = arith.constant 0 : index
    %59 = vector.load %arg7[%c0_26, %c0_27] : memref<128x128xbf16, #tpu.memory_space<vmem>>, vector<128x128xbf16>
    %cst_28 = arith.constant dense<0.000000e+00> : vector<8x128xf32>
    %60 = tpu.matmul %58, %59, %cst_28 {dimension_numbers = #tpu.dot_dimension_numbers<[1], [0], [0], [1], [0, 0, 1, 1], [], []>} : vector<8x128xbf16>, vector<128x128xbf16>, vector<8x128xf32> -> vector<8x128xf32>
    %c0_29 = arith.constant 0 : index
    %c0_30 = arith.constant 0 : index
    %61 = vector.load %arg8[%c0_29, %c0_30] : memref<1x128xf32, #tpu.memory_space<vmem>>, vector<1x128xf32>
    %62 = vector.broadcast %61 : vector<1x128xf32> to vector<8x128xf32>
    %63 = arith.addf %60, %62 : vector<8x128xf32>
    %64 = math.tanh %63 : vector<8x128xf32>
    %c0_31 = arith.constant 0 : index
    %c0_32 = arith.constant 0 : index
    %65 = vector.load %arg9[%c0_31, %c0_32] : memref<8x128xf32, #tpu.memory_space<vmem>>, vector<8x128xf32>
    tpu.vector_store %arg9[%c0_31, %c0_32], %64 {strides = array<i32>} : memref<8x128xf32, #tpu.memory_space<vmem>>, vector<8x128xf32>,
    return
  }
}

</mosaic_0001>

<llo_original>
// kernel: _generator_padded.1
$region0: #{_generator_padded.1}
  #allocation0 [shape = 'u32[]', space=smem, size = 0x4, offset = 0x4, fixed_abs, tag = 'smem constant byte address 0x4 - core index']
  #allocation1 [shape = 'u32[144,128]{1,0:T(1,128)}', space=vmem, size = 0x12000, scoped, tag = 'internal scratch']
  %s0 = inlined_call_operand.vmem [shape: bf16[8,16], index: 0, kind: input, shape index: {}]
  %s1 = inlined_call_operand.vmem [shape: bf16[16,128], index: 1, kind: input, shape index: {}]
  %s2 = inlined_call_operand.vmem [shape: f32[1,128], index: 2, kind: input, shape index: {}]
  %s3 = inlined_call_operand.vmem [shape: f32[1,128], index: 3, kind: input, shape index: {}]
  %s4 = inlined_call_operand.hbm [shape: bf16[128,128], index: 4, kind: input, shape index: {}]
  %s5 = inlined_call_operand.vmem [shape: f32[1,128], index: 5, kind: input, shape index: {}]
  %s6 = inlined_call_operand.vmem [shape: f32[1,128], index: 6, kind: input, shape index: {}]
  %s7 = inlined_call_operand.hbm [shape: bf16[128,128], index: 7, kind: input, shape index: {}]
  %s8 = inlined_call_operand.vmem [shape: f32[1,128], index: 8, kind: input, shape index: {}]
  %s9 = inlined_call_operand.hbm [shape: f32[8,128], index: 9, kind: output, shape index: {}]
  %s10 = sld [smem:[#allocation0]]
  $region54: #{_generator_padded.1} parent=0
    _
  %s12 = ssub.s32 1, %s10
  %s13 = scalar_select 0, %s12, %s10
  $region1: #{_generator_padded.1} parent=0
    #allocation2 [shape = 'u8[32768]{0}', space=vmem, size = 0x8000, scoped, tag = 'input window, operand 4, single buffered']
    #allocation3 [shape = 's32[1]{0}', space=sflag, size = 0x4, scoped, tag = 'scoped memory for _generator_padded.1']
    #allocation4 [shape = 's32[1]{0}', space=sflag, size = 0x4, scoped, tag = 'scoped memory for _generator_padded.1']
    #allocation5 [shape = 'u8[32768]{0}', space=vmem, size = 0x8000, scoped, tag = 'input window, operand 7, single buffered']
    #allocation6 [shape = 's32[1]{0}', space=sflag, size = 0x4, scoped, tag = 'scoped memory for _generator_padded.1']
    #allocation7 [shape = 'u8[4096]{0}', space=vmem, size = 0x1000, scoped, tag = 'output window, operand 0, single buffered']
    %14 = vsyncpa [#allocation3], 0
    %15 = vsyncpa [#allocation6], 0
    %16 = vsyncpa [#allocation4], 0
    // Predicated region
    $region2: #{_generator_padded.1} parent=1 // pred_check
      _
    $region3: #{_generator_padded.1} parent=1 // pred_check_branch
      %18 = sbr.rel (0) target = $region5
    $region4: #{_generator_padded.1} parent=1 // pred_region
      _
    $region5: #{_generator_padded.1} parent=1 // pred_fallthru
      _
    // Predicated region
    $region6: #{_generator_padded.1} parent=1 // pred_check
      _
    $region7: #{_generator_padded.1} parent=1 // pred_check_branch
      %20 = sbr.rel (0) target = $region9
    $region8: #{_generator_padded.1} parent=1 // pred_region
      _
    $region9: #{_generator_padded.1} parent=1 // pred_fallthru
      _
    // Predicated region
    $region10: #{_generator_padded.1} parent=1 // pred_check
      _
    $region11: #{_generator_padded.1} parent=1 // pred_check_branch
      %22 = sbr.rel (0) target = $region13
    $region12: #{_generator_padded.1} parent=1 // pred_region
      _
    $region13: #{_generator_padded.1} parent=1 // pred_fallthru
      _
    // Predicated region
    $region14: #{_generator_padded.1} parent=1 // pred_check
      _
    $region15: #{_generator_padded.1} parent=1 // pred_check_branch
      %24 = sbr.rel (0) target = $region17
    $region16: #{_generator_padded.1} parent=1 // pred_region
      _
    $region17: #{_generator_padded.1} parent=1 // pred_fallthru
      _
    // Predicated region
    $region18: #{_generator_padded.1} parent=1 // pred_check
      _
    $region19: #{_generator_padded.1} parent=1 // pred_check_branch
      %26 = sbr.rel (0) target = $region21
    $region20: #{_generator_padded.1} parent=1 // pred_region
      %s28 = ssub.s32 1024, 1024
      %29 = vsyncadd [#allocation3], %s28
      %s30 = sshll.u32 [#allocation2], 4
      %s31 = int_to_ptr.vmem [resolvable:$true] %s30
      %36 = dma.hbm_to_vmem [thread:$0]  %s4, 1024, %s31, [#allocation3], 64, 64, 4
    $region21: #{_generator_padded.1} parent=1 // pred_fallthru
      _
    // Predicated region
    $region22: #{_generator_padded.1} parent=1 // pred_check
      _
    $region23: #{_generator_padded.1} parent=1 // pred_check_branch
      %38 = sbr.rel (0) target = $region25
    $region24: #{_generator_padded.1} parent=1 // pred_region
      _
    $region25: #{_generator_padded.1} parent=1 // pred_fallthru
      _
    // Predicated region
    $region26: #{_generator_padded.1} parent=1 // pred_check
      _
    $region27: #{_generator_padded.1} parent=1 // pred_check_branch
      %40 = sbr.rel (0) target = $region29
    $region28: #{_generator_padded.1} parent=1 // pred_region
      _
    $region29: #{_generator_padded.1} parent=1 // pred_fallthru
      _
    // Predicated region
    $region30: #{_generator_padded.1} parent=1 // pred_check
      _
    $region31: #{_generator_padded.1} parent=1 // pred_check_branch
      %42 = sbr.rel (0) target = $region33
    $region32: #{_generator_padded.1} parent=1 // pred_region
      %s44 = ssub.s32 1024, 1024
      %45 = vsyncadd [#allocation6], %s44
      %s46 = sshll.u32 [#allocation5], 4
      %s47 = int_to_ptr.vmem [resolvable:$true] %s46
      %52 = dma.hbm_to_vmem [thread:$0]  %s7, 1024, %s47, [#allocation6], 64, 64, 4
    $region33: #{_generator_padded.1} parent=1 // pred_fallthru
      _
    // Predicated region
    $region34: #{_generator_padded.1} parent=1 // pred_check
      _
    $region35: #{_generator_padded.1} parent=1 // pred_check_branch
      %54 = sbr.rel (0) target = $region37
    $region36: #{_generator_padded.1} parent=1 // pred_region
      _
    $region37: #{_generator_padded.1} parent=1 // pred_fallthru
      _
    // Predicated region
    $region38: #{_generator_padded.1} parent=1 // pred_check
      _
    $region39: #{_generator_padded.1} parent=1 // pred_check_branch
      %56 = sbr.rel (0) target = $region41
    $region40: #{_generator_padded.1} parent=1 // pred_region
      %57 = dma.done [#allocation3], 1024
    $region41: #{_generator_padded.1} parent=1 // pred_fallthru
      _
    // Predicated region
    $region42: #{_generator_padded.1} parent=1 // pred_check
      _
    $region43: #{_generator_padded.1} parent=1 // pred_check_branch
      %59 = sbr.rel (0) target = $region45
    $region44: #{_generator_padded.1} parent=1 // pred_region
      %60 = dma.done [#allocation6], 1024
    $region45: #{_generator_padded.1} parent=1 // pred_fallthru
      _
    %v62 = vld [vmem:[%s0] sm:$0xf]
    %v63 = vld [vmem:[%s1] sm:$0xf]
    %v64 = vld [vmem:[%s1 + $0x4] sm:$0xf]
    %v67 = vunpack.c.l.b16 %v63
    %v68 = vunpack.c.l.b16 %v64
    %v69 = vpack.c.b16 %v68, %v67
    %vm71 = vcmask 130048
    %v73 = vsel %vm71, %v62, 0
    %75 = vmatprep.subr.bf16.mxu0 0
    %76 = vmatpush1.bf16.msra.mxu0 0
    %77 = vmatprep.subr.bf16.mxu0 0
    %78 = vmatpush1.bf16.msra.mxu0 0
    %79 = vmatprep.subr.bf16.mxu0 0
    %80 = vmatpush1.bf16.msra.mxu0 0
    %81 = vmatprep.subr.bf16.mxu0 0
    %82 = vmatpush1.bf16.msra.mxu0 0
    %83 = vmatprep.subr.bf16.mxu0 0
    %84 = vmatpush1.bf16.msra.mxu0 0
    %85 = vmatprep.subr.bf16.mxu0 0
    %86 = vmatpush1.bf16.msra.mxu0 0
    %87 = vmatprep.subr.bf16.mxu0 0
    %88 = vmatpush1.bf16.msra.mxu0 0
    %89 = vmatprep.subr.bf16.mxu0 0
    %90 = vmatpush1.bf16.msra.mxu0 %v69
    %91 = vmatprep.subr.bf16.mxu0 0
    %92 = vmatpush2.bf16.msra.mxu0 0
    %93 = vmatprep.subr.bf16.mxu0 0
    %94 = vmatpush2.bf16.msra.mxu0 0
    %95 = vmatprep.subr.bf16.mxu0 0
    %96 = vmatpush2.bf16.msra.mxu0 0
    %97 = vmatprep.subr.bf16.mxu0 0
    %98 = vmatpush2.bf16.msra.mxu0 0
    %99 = vmatprep.subr.bf16.mxu0 0
    %100 = vmatpush2.bf16.msra.mxu0 0
    %101 = vmatprep.subr.bf16.mxu0 0
    %102 = vmatpush2.bf16.msra.mxu0 0
    %103 = vmatprep.subr.bf16.mxu0 0
    %104 = vmatpush2.bf16.msra.mxu0 0
    %105 = vmatprep.subr.bf16.mxu0 0
    %106 = vmatpush2.bf16.msra.mxu0 0
    %107 = vmatprep.mubr.bf16.mxu0 0
    %108 = vmatmul.mubr.bf16.gmra.mxu0 %v73
    %v109 = vpop.f32.mrf.mxu0
    %v110 = vadd.f32 0.0, %v109
    %v111 = vpop.f32.mrf.mxu0
    %v112 = vpop.f32.mrf.mxu0
    %v113 = vpop.f32.mrf.mxu0
    %114 = vdwg.mxu0
    %v115 = vld [vmem:[%s2] sm:$0x1]
    %v116 = vld [vmem:[%s3] sm:$0x1]
    %v117 = vrot.slane %v110, 4
    %v118 = vadd.f32 %v110, %v117
    %v119 = vrot.slane %v118, 2
    %v120 = vadd.f32 %v118, %v119
    %v121 = vrot.slane %v120, 1
    %v122 = vadd.f32 %v120, %v121
    %v123 = vrcp.pop 8.0
    %v124 = vmul.f32 %v122, %v123
    %v125 = vmul.f32 %v110, %v110
    %v126 = vrot.slane %v125, 4
    %v127 = vadd.f32 %v125, %v126
    %v128 = vrot.slane %v127, 2
    %v129 = vadd.f32 %v127, %v128
    %v130 = vrot.slane %v129, 1
    %v131 = vadd.f32 %v129, %v130
    %v132 = vmul.f32 %v131, %v123
    %v133 = vmul.f32 %v124, %v124
    %v134 = vsub.f32 %v132, %v133
    %v135 = vadd.f32 %v134, 0.8
    %v136 = vrsqrt.pop %v135
    %v137 = vmul.f32 %v115, %v136
    %v138 = vmul.f32 %v124, %v137
    %v139 = vsub.f32 %v116, %v138
    %v141 = vlaneseq
    %v142 = vshrl.u32 %v141, 7
    %v143 = vsub.s32 0, %v142
    %v144 = vrot.slane %v137, %v143
    %v146 = vmul.f32 %v110, %v144
    %v148 = vlaneseq
    %v149 = vshrl.u32 %v148, 7
    %v150 = vsub.s32 0, %v149
    %v151 = vrot.slane %v139, %v150
    %v153 = vadd.f32 %v146, %v151
    %v154 = vmul.f32 %v153, 0.2
    %v155 = vmax.f32 %v153, %v154
    %v156 = vpack.c.bf16 %v155, %v155
    %v157 = vld [vmem:[#allocation2] sm:$0xf]
    %v158 = vld [vmem:[#allocation2 + $0x4] sm:$0xf]
    %v159 = vld [vmem:[#allocation2 + $0x8] sm:$0xf]
    %v160 = vld [vmem:[#allocation2 + $0xc] sm:$0xf]
    %v161 = vld [vmem:[#allocation2 + $0x10] sm:$0xf]
    %v162 = vld [vmem:[#allocation2 + $0x14] sm:$0xf]
    %v163 = vld [vmem:[#allocation2 + $0x18] sm:$0xf]
    %v164 = vld [vmem:[#allocation2 + $0x1c] sm:$0xf]
    %v165 = vld [vmem:[#allocation2 + $0x20] sm:$0xf]
    %v166 = vld [vmem:[#allocation2 + $0x24] sm:$0xf]
    %v167 = vld [vmem:[#allocation2 + $0x28] sm:$0xf]
    %v168 = vld [vmem:[#allocation2 + $0x2c] sm:$0xf]
    %v169 = vld [vmem:[#allocation2 + $0x30] sm:$0xf]
    %v170 = vld [vmem:[#allocation2 + $0x34] sm:$0xf]
    %v171 = vld [vmem:[#allocation2 + $0x38] sm:$0xf]
    %v172 = vld [vmem:[#allocation2 + $0x3c] sm:$0xf]
    %v189 = vunpack.c.l.b16 %v157
    %v190 = vunpack.c.l.b16 %v158
    %v191 = vunpack.c.l.b16 %v159
    %v192 = vunpack.c.l.b16 %v160
    %v193 = vunpack.c.l.b16 %v161
    %v194 = vunpack.c.l.b16 %v162
    %v195 = vunpack.c.l.b16 %v163
    %v196 = vunpack.c.l.b16 %v164
    %v197 = vunpack.c.l.b16 %v165
    %v198 = vunpack.c.l.b16 %v166
    %v199 = vunpack.c.l.b16 %v167
    %v200 = vunpack.c.l.b16 %v168
    %v201 = vunpack.c.l.b16 %v169
    %v202 = vunpack.c.l.b16 %v170
    %v203 = vunpack.c.l.b16 %v171
    %v204 = vunpack.c.l.b16 %v172
    %v205 = vpack.c.b16 %v190, %v189
    %v206 = vpack.c.b16 %v192, %v191
    %v207 = vpack.c.b16 %v194, %v193
    %v208 = vpack.c.b16 %v196, %v195
    %v209 = vpack.c.b16 %v198, %v197
    %v210 = vpack.c.b16 %v200, %v199
    %v211 = vpack.c.b16 %v202, %v201
    %v212 = vpack.c.b16 %v204, %v203
    %221 = vmatprep.subr.bf16.mxu0 0
    %222 = vmatpush1.bf16.msra.mxu0 %v212
    %223 = vmatprep.subr.bf16.mxu0 0
    %224 = vmatpush1.bf16.msra.mxu0 %v211
    %225 = vmatprep.subr.bf16.mxu0 0
    %226 = vmatpush1.bf16.msra.mxu0 %v210
    %227 = vmatprep.subr.bf16.mxu0 0
    %228 = vmatpush1.bf16.msra.mxu0 %v209
    %229 = vmatprep.subr.bf16.mxu0 0
    %230 = vmatpush1.bf16.msra.mxu0 %v208
    %231 = vmatprep.subr.bf16.mxu0 0
    %232 = vmatpush1.bf16.msra.mxu0 %v207
    %233 = vmatprep.subr.bf16.mxu0 0
    %234 = vmatpush1.bf16.msra.mxu0 %v206
    %235 = vmatprep.subr.bf16.mxu0 0
    %236 = vmatpush1.bf16.msra.mxu0 %v205
    %237 = vmatprep.subr.bf16.mxu0 0
    %238 = vmatpush2.bf16.msra.mxu0 0
    %239 = vmatprep.subr.bf16.mxu0 0
    %240 = vmatpush2.bf16.msra.mxu0 0
    %241 = vmatprep.subr.bf16.mxu0 0
    %242 = vmatpush2.bf16.msra.mxu0 0
    %243 = vmatprep.subr.bf16.mxu0 0
    %244 = vmatpush2.bf16.msra.mxu0 0
    %245 = vmatprep.subr.bf16.mxu0 0
    %246 = vmatpush2.bf16.msra.mxu0 0
    %247 = vmatprep.subr.bf16.mxu0 0
    %248 = vmatpush2.bf16.msra.mxu0 0
    %249 = vmatprep.subr.bf16.mxu0 0
    %250 = vmatpush2.bf16.msra.mxu0 0
    %251 = vmatprep.subr.bf16.mxu0 0
    %252 = vmatpush2.bf16.msra.mxu0 0
    %253 = vmatprep.mubr.bf16.mxu0 0
    %254 = vmatmul.mubr.bf16.gmra.mxu0 %v156
    %v255 = vpop.f32.mrf.mxu0
    %v256 = vadd.f32 0.0, %v255
    %v257 = vpop.f32.mrf.mxu0
    %v258 = vpop.f32.mrf.mxu0
    %v259 = vpop.f32.mrf.mxu0
    %260 = vdwg.mxu0
    %v261 = vld [vmem:[%s5] sm:$0x1]
    %v262 = vld [vmem:[%s6] sm:$0x1]
    %v263 = vrot.slane %v256, 4
    %v264 = vadd.f32 %v256, %v263
    %v265 = vrot.slane %v264, 2
    %v266 = vadd.f32 %v264, %v265
    %v267 = vrot.slane %v266, 1
    %v268 = vadd.f32 %v266, %v267
    %v269 = vmul.f32 %v268, %v123
    %v270 = vmul.f32 %v256, %v256
    %v271 = vrot.slane %v270, 4
    %v272 = vadd.f32 %v270, %v271
    %v273 = vrot.slane %v272, 2
    %v274 = vadd.f32 %v272, %v273
    %v275 = vrot.slane %v274, 1
    %v276 = vadd.f32 %v274, %v275
    %v277 = vmul.f32 %v276, %v123
    %v278 = vmul.f32 %v269, %v269
    %v279 = vsub.f32 %v277, %v278
    %v280 = vadd.f32 %v279, 0.8
    %v281 = vrsqrt.pop %v280
    %v282 = vmul.f32 %v261, %v281
    %v283 = vmul.f32 %v269, %v282
    %v284 = vsub.f32 %v262, %v283
    %v286 = vlaneseq
    %v287 = vshrl.u32 %v286, 7
    %v288 = vsub.s32 0, %v287
    %v289 = vrot.slane %v282, %v288
    %v291 = vmul.f32 %v256, %v289
    %v293 = vlaneseq
    %v294 = vshrl.u32 %v293, 7
    %v295 = vsub.s32 0, %v294
    %v296 = vrot.slane %v284, %v295
    %v298 = vadd.f32 %v291, %v296
    %v299 = vmul.f32 %v298, 0.2
    %v300 = vmax.f32 %v298, %v299
    %v301 = vpack.c.bf16 %v300, %v300
    %v302 = vld [vmem:[#allocation5] sm:$0xf]
    %v303 = vld [vmem:[#allocation5 + $0x4] sm:$0xf]
    %v304 = vld [vmem:[#allocation5 + $0x8] sm:$0xf]
    %v305 = vld [vmem:[#allocation5 + $0xc] sm:$0xf]
    %v306 = vld [vmem:[#allocation5 + $0x10] sm:$0xf]
    %v307 = vld [vmem:[#allocation5 + $0x14] sm:$0xf]
    %v308 = vld [vmem:[#allocation5 + $0x18] sm:$0xf]
    %v309 = vld [vmem:[#allocation5 + $0x1c] sm:$0xf]
    %v310 = vld [vmem:[#allocation5 + $0x20] sm:$0xf]
    %v311 = vld [vmem:[#allocation5 + $0x24] sm:$0xf]
    %v312 = vld [vmem:[#allocation5 + $0x28] sm:$0xf]
    %v313 = vld [vmem:[#allocation5 + $0x2c] sm:$0xf]
    %v314 = vld [vmem:[#allocation5 + $0x30] sm:$0xf]
    %v315 = vld [vmem:[#allocation5 + $0x34] sm:$0xf]
    %v316 = vld [vmem:[#allocation5 + $0x38] sm:$0xf]
    %v317 = vld [vmem:[#allocation5 + $0x3c] sm:$0xf]
    %v318 = vld [vmem:[%s8] sm:$0x1]
    %v320 = vlaneseq
    %v321 = vshrl.u32 %v320, 7
    %v322 = vsub.s32 0, %v321
    %v323 = vrot.slane %v318, %v322
    %v341 = vunpack.c.l.b16 %v302
    %v342 = vunpack.c.l.b16 %v303
    %v343 = vunpack.c.l.b16 %v304
    %v344 = vunpack.c.l.b16 %v305
    %v345 = vunpack.c.l.b16 %v306
    %v346 = vunpack.c.l.b16 %v307
    %v347 = vunpack.c.l.b16 %v308
    %v348 = vunpack.c.l.b16 %v309
    %v349 = vunpack.c.l.b16 %v310
    %v350 = vunpack.c.l.b16 %v311
    %v351 = vunpack.c.l.b16 %v312
    %v352 = vunpack.c.l.b16 %v313
    %v353 = vunpack.c.l.b16 %v314
    %v354 = vunpack.c.l.b16 %v315
    %v355 = vunpack.c.l.b16 %v316
    %v356 = vunpack.c.l.b16 %v317
    %v357 = vpack.c.b16 %v342, %v341
    %v358 = vpack.c.b16 %v344, %v343
    %v359 = vpack.c.b16 %v346, %v345
    %v360 = vpack.c.b16 %v348, %v347
    %v361 = vpack.c.b16 %v350, %v349
    %v362 = vpack.c.b16 %v352, %v351
    %v363 = vpack.c.b16 %v354, %v353
    %v364 = vpack.c.b16 %v356, %v355
    %373 = vmatprep.subr.bf16.mxu0 0
    %374 = vmatpush1.bf16.msra.mxu0 %v364
    %375 = vmatprep.subr.bf16.mxu0 0
    %376 = vmatpush1.bf16.msra.mxu0 %v363
    %377 = vmatprep.subr.bf16.mxu0 0
    %378 = vmatpush1.bf16.msra.mxu0 %v362
    %379 = vmatprep.subr.bf16.mxu0 0
    %380 = vmatpush1.bf16.msra.mxu0 %v361
    %381 = vmatprep.subr.bf16.mxu0 0
    %382 = vmatpush1.bf16.msra.mxu0 %v360
    %383 = vmatprep.subr.bf16.mxu0 0
    %384 = vmatpush1.bf16.msra.mxu0 %v359
    %385 = vmatprep.subr.bf16.mxu0 0
    %386 = vmatpush1.bf16.msra.mxu0 %v358
    %387 = vmatprep.subr.bf16.mxu0 0
    %388 = vmatpush1.bf16.msra.mxu0 %v357
    %389 = vmatprep.subr.bf16.mxu0 0
    %390 = vmatpush2.bf16.msra.mxu0 0
    %391 = vmatprep.subr.bf16.mxu0 0
    %392 = vmatpush2.bf16.msra.mxu0 0
    %393 = vmatprep.subr.bf16.mxu0 0
    %394 = vmatpush2.bf16.msra.mxu0 0
    %395 = vmatprep.subr.bf16.mxu0 0
    %396 = vmatpush2.bf16.msra.mxu0 0
    %397 = vmatprep.subr.bf16.mxu0 0
    %398 = vmatpush2.bf16.msra.mxu0 0
    %399 = vmatprep.subr.bf16.mxu0 0
    %400 = vmatpush2.bf16.msra.mxu0 0
    %401 = vmatprep.subr.bf16.mxu0 0
    %402 = vmatpush2.bf16.msra.mxu0 0
    %403 = vmatprep.subr.bf16.mxu0 0
    %404 = vmatpush2.bf16.msra.mxu0 0
    %405 = vmatprep.mubr.bf16.mxu0 0
    %406 = vmatmul.mubr.bf16.gmra.mxu0 %v301
    %v407 = vpop.f32.mrf.mxu0
    %v408 = vadd.f32 %v323, %v407
    %v409 = vpop.f32.mrf.mxu0
    %v410 = vpop.f32.mrf.mxu0
    %v411 = vpop.f32.mrf.mxu0
    %412 = vdwg.mxu0
    %v413 = vtanh.pop %v408
    %414 = vst [vmem:[#allocation7] sm:$0xff] %v413
    // Predicated region
    $region46: #{_generator_padded.1} parent=1 // pred_check
      _
    $region47: #{_generator_padded.1} parent=1 // pred_check_branch
      %416 = sbr.rel (0) target = $region49
    $region48: #{_generator_padded.1} parent=1 // pred_region
      %s418 = ssub.s32 128, 128
      %419 = vsyncadd [#allocation4], %s418
      %s421 = sshll.u32 [#allocation7], 4
      %s422 = int_to_ptr.vmem [resolvable:$true] %s421
      %424 = dma.vmem_to_hbm [thread:$0]  %s422, 128, %s9, [#allocation4]
    $region49: #{_generator_padded.1} parent=1 // pred_fallthru
      _
    // Predicated region
    $region50: #{_generator_padded.1} parent=1 // pred_check
      _
    $region51: #{_generator_padded.1} parent=1 // pred_check_branch
      %426 = sbr.rel (0) target = $region53
    $region52: #{_generator_padded.1} parent=1 // pred_region
      %427 = dma.done [#allocation4], 128
    $region53: #{_generator_padded.1} parent=1 // pred_fallthru
      _
    %428 = vsyncpa [#allocation3], 1
    %429 = vsyncpa [#allocation6], 1
    %430 = vsyncpa [#allocation4], 1

</llo_original>
